<compile_context>
chip_gen: v6e
topology: v6e:2x2x1
jax: 0.10.0
libtpu: 0.0.40
codegen_flags: <defaults>
</compile_context>

<pallas_src>
import functools

import jax
import jax.numpy as jnp
from jax.experimental import pallas as pl
from jax.experimental.pallas import tpu as pltpu

_BIG = 1e30          # "+inf" sentinel that survives f32 math
_VALID_MAX = 1e29    # anything >= this is a masked / padded candidate


def _round_up(x, m):
    return ((x + m - 1) // m) * m


def _vmem_budget():
    """(vmem_limit_bytes, per-call tile working-set target), per chip."""
    cap = None
    try:
        info = pltpu.get_tpu_info()
        for name in ("vmem_capacity_bytes", "vmem_bytes", "vmem_size_bytes"):
            if hasattr(info, name):
                cap = int(getattr(info, name))
                break
    except Exception:
        cap = None
    if cap is None:
        cap = 64 * 1024 * 1024                      # assume smallest (v7x-safe)
    if cap >= 96 * 1024 * 1024:                     # v5e / v6e: 128 MiB physical
        return 64 * 1024 * 1024, 28 * 1024 * 1024
    return 32 * 1024 * 1024, 14 * 1024 * 1024       # v7x: 64 MiB physical


_VMEM_LIMIT, _TILE_BUDGET = _vmem_budget()


def _probe_single_buffer():
    """True if pipeline_mode=pl.Buffered(1) lowers on this jax/libtpu."""
    try:
        def _k(x_ref, w_ref, o_ref):
            o_ref[...] = x_ref[...] + w_ref[...]
        x = jnp.zeros((16, 128), jnp.float32)
        w = jnp.ones((8, 128), jnp.float32)
        y = pl.pallas_call(
            _k,
            out_shape=jax.ShapeDtypeStruct((16, 128), jnp.float32),
            grid=(2,),
            in_specs=[pl.BlockSpec((8, 128), lambda i: (i, 0)),
                      pl.BlockSpec((8, 128), lambda i: (0, 0),
                                   pipeline_mode=pl.Buffered(buffer_count=1))],
            out_specs=pl.BlockSpec((8, 128), lambda i: (i, 0)),
        )(x, w)
        jax.block_until_ready(y)
        return True
    except Exception:
        return False


_SINGLE_BUFFER_OK = _probe_single_buffer()


def _const_spec(shape):
    """BlockSpec for a constant-index operand (weights / bias): single-buffer."""
    idx_map = lambda *_: (0,) * len(shape)
    if _SINGLE_BUFFER_OK:
        return pl.BlockSpec(shape, idx_map,
                            pipeline_mode=pl.Buffered(buffer_count=1))
    return pl.BlockSpec(shape, idx_map)


def _pick_tn(n, per_row_bytes, fixed_bytes):
    """Largest point tile whose working set fits the budget; clamped to the
    array size and to >= 2 blocks (keeps both v7x TensorCores busy)."""
    if n <= 256:
        return n                                  # single tiny full block
    avail = max(_TILE_BUDGET - fixed_bytes, 2 * 1024 * 1024)
    tn = 2048
    while tn > 128 and tn * per_row_bytes > avail:
        tn //= 2
    tn = min(tn, _round_up(pl.cdiv(n, 2), 128))   # >=2 blocks, no padded megablock
    return max(tn, 128)


# --------------------------------------------------------------------------
# Pallas kernel 1: fused pointwise-MLP CHAIN (multiple residual segments)
#   one pallas_call per backbone stage / head: activations stay in VMEM.
# --------------------------------------------------------------------------
def _fused_chain_kernel(x_ref, *refs, seg_layers, seg_residual, seg_relu_last):
    o_ref = refs[-1]
    wrefs = refs[:-1]
    x = x_ref[...]
    h = x                                         # bf16 between layers
    p = 0
    n_seg = len(seg_layers)
    for s in range(n_seg):
        seg_in = h
        nl = seg_layers[s]
        for l in range(nl):
            w = wrefs[p][...]
            b = wrefs[p + 1][...]
            p += 2
            acc = jnp.dot(h.astype(w.dtype), w,
                          preferred_element_type=jnp.float32)
            acc = acc + b.astype(jnp.float32)
            if l < nl - 1:
                acc = jnp.maximum(acc, 0.0)
                h = acc.astype(x.dtype)
            else:
                if seg_residual[s]:
                    acc = acc + seg_in.astype(jnp.float32)
                if seg_relu_last[s]:
                    acc = jnp.maximum(acc, 0.0)
                if s < n_seg - 1:
                    h = acc.astype(x.dtype)
                else:
                    o_ref[...] = acc.astype(o_ref.dtype)


def fused_mlp_chain(x, segments, out_dtype=None):
    """x: [N, Cin].  segments: list of dicts
         {'ws': [Ci,Co] bf16 list, 'bs': [1,Co] f32 list,
          'residual': bool, 'relu_last': bool}
       Intermediate layers inside a segment always get ReLU."""
    n, cin = x.shape
    out_dtype = jnp.dtype(out_dtype) if out_dtype is not None else x.dtype

    ws, bs = [], []
    seg_layers, seg_res, seg_relu = [], [], []
    c = cin
    for seg in segments:
        sw, sb = list(seg["ws"]), list(seg["bs"])
        assert len(sw) == len(sb)
        if seg.get("residual", False):
            assert int(sw[0].shape[0]) == int(sw[-1].shape[1]) == c, \
                "residual segment needs matching in/out channels"
        seg_layers.append(len(sw))
        seg_res.append(bool(seg.get("residual", False)))
        seg_relu.append(bool(seg.get("relu_last", True)))
        ws += sw
        bs += sb
        c = int(sw[-1].shape[1])
    cout = c

    max_c = max([cin] + [int(w.shape[1]) for w in ws])
    per_row = (2 * cin * x.dtype.itemsize          # x, double-buffered
               + 2 * cout * out_dtype.itemsize     # out, double-buffered
               + 12 * max_c)                       # f32/bf16 intermediates (est.)
    fixed = sum(int(w.size) * w.dtype.itemsize + int(b.size) * 4
                for w, b in zip(ws, bs))
    if not _SINGLE_BUFFER_OK:
        fixed *= 2
    tn = _pick_tn(n, per_row, fixed)

    in_specs = [pl.BlockSpec((tn, cin), lambda i: (i, 0))]
    args = [x]
    for w, b in zip(ws, bs):
        ci, co = int(w.shape[0]), int(w.shape[1])
        in_specs.append(_const_spec((ci, co)))
        in_specs.append(_const_spec((1, co)))
        args += [w, b]

    kern = functools.partial(_fused_chain_kernel,
                             seg_layers=tuple(seg_layers),
                             seg_residual=tuple(seg_res),
                             seg_relu_last=tuple(seg_relu))
    return pl.pallas_call(
        kern,
        out_shape=jax.ShapeDtypeStruct((n, cout), out_dtype),
        grid=(pl.cdiv(n, tn),),
        in_specs=in_specs,
        out_specs=pl.BlockSpec((tn, cout), lambda i: (i, 0)),
        compiler_params=pltpu.CompilerParams(
            dimension_semantics=("parallel",),
            vmem_limit_bytes=_VMEM_LIMIT),
    )(*args)


def batched_fused_chain(x, segments, **kw):
    """x: [B, N, C] -> [B, N, Cout]; batch folded into the point axis."""
    b, n, c = x.shape
    y = fused_mlp_chain(x.reshape(b * n, c), segments, **kw)
    return y.reshape(b, n, y.shape[-1])


# --------------------------------------------------------------------------
# Pallas kernel 2: fused squared-distance + running top-k (k nearest points)
#   grid = (B, M tiles, Np tiles); Np is an "arbitrary" reduction axis and the
#   running k smallest distances / indices live in the revisited output block,
#   so no [B, M, Np] distance matrix ever reaches HBM.  Each selection pass
#   uses a single cross-lane min on a packed (distance, column) int32 key.
# --------------------------------------------------------------------------
def _knn_kernel(q_ref, p_ref, vals_ref, idx_ref, *, k, npts, low_bits):
    np_i = pl.program_id(2)
    tm = q_ref.shape[1]
    tnp = p_ref.shape[2]
    low_mask = (1 << low_bits) - 1

    @pl.when(np_i == 0)
    def _init():
        vals_ref[...] = jnp.full(vals_ref.shape, _BIG, jnp.float32)
        idx_ref[...] = jnp.zeros(idx_ref.shape, jnp.int32)

    q = q_ref[0].astype(jnp.float32)                      # (tm, 8) augmented
    p = p_ref[0].astype(jnp.float32)                      # (8, tnp) augmented
    # single MXU pass gives |q|^2 + |p|^2 - 2 q.p  (no XLU reductions needed)
    d = jnp.dot(q, p, preferred_element_type=jnp.float32)  # (tm, tnp)
    d = jnp.maximum(d, 0.0)                               # clamp f32 cancellation

    col = jax.lax.broadcasted_iota(jnp.int32, (tm, tnp), 1)
    d = jnp.where(col + np_i * tnp < npts, d, _BIG)       # mask ragged Np tile

    # pack (distance, local column) into ONE monotonic int32 key: a single
    # min-reduce per selection pass yields both the value and its argmin.
    key = jnp.bitwise_or(
        jnp.bitwise_and(pltpu.bitcast(d, jnp.int32), ~low_mask), col)

    topv = vals_ref[0]                                    # (tm, k) running mins
    topi = idx_ref[0]
    kcol = jax.lax.broadcasted_iota(jnp.int32, (tm, k), 1)
    for _ in range(k):
        kmin = jnp.min(key, axis=-1, keepdims=True)                    # (tm, 1)
        win_d = pltpu.bitcast(jnp.bitwise_and(kmin, ~low_mask), jnp.float32)
        win_i = jnp.bitwise_and(kmin, low_mask) + np_i * tnp           # global id
        key = jnp.where(key == kmin, jnp.int32(0x7FFFFFFF), key)       # pop winner
        worst = jnp.max(topv, axis=-1, keepdims=True)
        wslot = jnp.min(jnp.where(topv == worst, kcol, k),
                        axis=-1, keepdims=True)
        take = (win_d < worst) & (win_d < _VALID_MAX) & (kcol == wslot)
        topv = jnp.where(take, win_d, topv)
        topi = jnp.where(take, win_i, topi)
    vals_ref[0] = topv
    idx_ref[0] = topi


def knn_topk(query_xyz, point_xyz, k):
    """query [B,M,3], points [B,Np,3] -> (sq-dist [B,M,k] f32, idx [B,M,k] i32)."""
    bsz, m, _ = query_xyz.shape
    npts = point_xyz.shape[1]
    q = query_xyz.astype(jnp.float32)
    p = point_xyz.astype(jnp.float32)
    qq = jnp.sum(q * q, axis=-1, keepdims=True)
    pp = jnp.sum(p * p, axis=-1, keepdims=True)
    q_aug = jnp.concatenate(
        [q, qq, jnp.ones_like(qq), jnp.zeros((bsz, m, 3), jnp.float32)], -1)
    # TODO(synk): build p_aug inside the kernel from a (3, tnp) tile to drop
    #   this XLA concat+transpose pass and ~2.7x of the p-stream DMA.
    p_aug = jnp.concatenate(
        [-2.0 * p, jnp.ones_like(pp), pp, jnp.zeros((bsz, npts, 3), jnp.float32)],
        -1)
    p_aug = jnp.transpose(p_aug, (0, 2, 1))               # [B, 8, Np]

    tm = m if m <= 256 else 256
    tnp = npts if npts <= 1024 else 1024
    low_bits = max((tnp - 1).bit_length(), 1)
    grid = (bsz, pl.cdiv(m, tm), pl.cdiv(npts, tnp))

    vals, idx = pl.pallas_call(
        functools.partial(_knn_kernel, k=k, npts=npts, low_bits=low_bits),
        out_shape=(jax.ShapeDtypeStruct((bsz, m, k), jnp.float32),
                   jax.ShapeDtypeStruct((bsz, m, k), jnp.int32)),
        grid=grid,
        in_specs=[pl.BlockSpec((1, tm, 8), lambda b, i, j: (b, i, 0)),
                  pl.BlockSpec((1, 8, tnp), lambda b, i, j: (b, 0, j))],
        out_specs=(pl.BlockSpec((1, tm, k), lambda b, i, j: (b, i, 0)),
                   pl.BlockSpec((1, tm, k), lambda b, i, j: (b, i, 0))),
        compiler_params=pltpu.CompilerParams(
            dimension_semantics=("parallel", "parallel", "arbitrary"),
            vmem_limit_bytes=_VMEM_LIMIT),
    )(q_aug, p_aug)
    return vals, idx


# --------------------------------------------------------------------------
# Pallas kernel 3: kNN gather + running max aggregation
#   indices scalar-prefetched into SMEM, previous-level features kept as a
#   per-batch VMEM slab, running maximum per query row -- the [B, Ns, k, C]
#   gathered tensor never exists in HBM.
# --------------------------------------------------------------------------
def _gather_max_kernel(idx_ref, feat_ref, o_ref, *, k, ns):
    b = pl.program_id(0)
    i = pl.program_id(1)
    tm = o_ref.shape[1]
    nv = jnp.minimum(tm, ns - i * tm)          # valid query rows in this tile

    def body(q, carry):
        base = (b * ns + i * tm + q) * k
        acc = feat_ref[0, pl.ds(idx_ref[base], 1), :]           # (1, C)
        for j in range(1, k):
            acc = jnp.maximum(acc, feat_ref[0, pl.ds(idx_ref[base + j], 1), :])
        o_ref[0, pl.ds(q, 1), :] = acc
        return carry

    jax.lax.fori_loop(0, nv, body, 0)


def knn_gather_max(sub_xyz, prev_xyz, prev_feat, k):
    """Max-pool the features of the k nearest previous-level neighbours."""
    _, idx = knn_topk(sub_xyz, prev_xyz, k)                 # [B, Ns, k] int32
    bsz, ns, _ = idx.shape
    npts, c = int(prev_feat.shape[1]), int(prev_feat.shape[2])
    tm = ns if ns <= 512 else 512
    idx_flat = idx.reshape(-1)                              # SMEM scalar prefetch

    feat_kw = {}
    if _SINGLE_BUFFER_OK:
        feat_kw["pipeline_mode"] = pl.Buffered(buffer_count=1)
    grid_spec = pltpu.PrefetchScalarGridSpec(
        num_scalar_prefetch=1,
        grid=(bsz, pl.cdiv(ns, tm)),
        in_specs=[pl.BlockSpec((1, npts, c), lambda b, i, idx_r: (b, 0, 0),
                               **feat_kw)],
        out_specs=pl.BlockSpec((1, tm, c), lambda b, i, idx_r: (b, i, 0)),
    )
    try:
        return pl.pallas_call(
            functools.partial(_gather_max_kernel, k=k, ns=ns),
            out_shape=jax.ShapeDtypeStruct((bsz, ns, c), prev_feat.dtype),
            grid_spec=grid_spec,
            compiler_params=pltpu.CompilerParams(
                dimension_semantics=("parallel", "arbitrary"),
                vmem_limit_bytes=_VMEM_LIMIT),
        )(idx_flat, prev_feat)
    except Exception:
        # TODO(synk): fallback path (XLA gather + max) materializes [B,Ns,k,C].
        gathered = jax.vmap(lambda f, ix: f[ix])(prev_feat, idx)
        return jnp.max(gathered, axis=2)


# --------------------------------------------------------------------------
# Glue: 3-NN inverse-distance interpolation (SQN head feature query)
# --------------------------------------------------------------------------
def three_nn_interpolate(query_xyz, batch_inds, level_xyz, level_feat):
    """3-NN inverse-distance interpolation of level features at query points."""
    bsz = level_xyz.shape[0]
    m = query_xyz.shape[0]
    # TODO(synk): distances are computed against every batch and the right row
    #   selected afterwards; scalar-prefetching batch_inds into the kNN
    #   index_map would remove the Bx redundant compute (M is tiny here).
    q = jnp.broadcast_to(query_xyz[None], (bsz, m, 3))
    d_all, idx_all = knn_topk(q, level_xyz, 3)              # [B, M, 3] each
    rows = jnp.arange(m)
    d = d_all[batch_inds, rows]                             # [M, 3] sq-distances
    idx = idx_all[batch_inds, rows]                         # [M, 3] int32
    # TODO(synk): verify inverse-(squared)-distance weights + eps against the
    #   PyTorch three_nn reference.
    dist = jnp.maximum(d, 1e-10)
    w = 1.0 / dist
    w = w / jnp.sum(w, axis=-1, keepdims=True)
    nb = level_feat[batch_inds[:, None], idx]               # [M, 3, C] gather
    return jnp.sum(nb.astype(jnp.float32) * w[..., None], axis=1)   # [M, C]


# --------------------------------------------------------------------------
# Parameters (deterministic kaiming-normal init, as in init_weights())
# --------------------------------------------------------------------------
def _kaiming(key, cin, cout):
    w = jax.random.normal(key, (cin, cout), jnp.float32) * jnp.sqrt(2.0 / cin)
    return w.astype(jnp.bfloat16)


def init_params(key, cfg):
    width, depth, ratio = cfg["width"], cfg["depth"], cfg["bottleneck_ratio"]
    cin, nc = cfg["input_features_dim"], cfg["num_classes"]
    keys = iter(jax.random.split(key, 256))

    def lin(ci, co):
        return _kaiming(next(keys), ci, co), jnp.zeros((1, co), jnp.float32)

    p = {}
    p["stem1_w"], p["stem1_b"] = lin(cin, width // 2)
    p["stem2_w"], p["stem2_b"] = lin(width // 2, width)
    c = width
    for s in range(len(cfg["npoints"])):
        c_out = c * 2
        p[f"tr{s}_w"], p[f"tr{s}_b"] = lin(c, c_out)
        for d in range(depth):
            blk = {}
            blk["w1"], blk["b1"] = lin(c_out, c_out // ratio)
            blk["w2"], blk["b2"] = lin(c_out // ratio, c_out // ratio)
            blk["w3"], blk["b3"] = lin(c_out // ratio, c_out)
            p[f"blk{s}_{d}"] = blk
        c = c_out
    cat_dim = width + sum(width * (2 ** (s + 1))
                          for s in range(len(cfg["npoints"])))
    p["h1_w"], p["h1_b"] = lin(cat_dim, 128)
    p["h2_w"], p["h2_b"] = lin(128, 64)
    p["h3_w"], p["h3_b"] = lin(64, nc)
    return p


# --------------------------------------------------------------------------
# ResNet point-cloud backbone (multi-resolution encoder)
# --------------------------------------------------------------------------
def resnet_backbone(params, xyz, mask, features, cfg):
    """xyz: [B,N,3], mask: [B,N] bool, features: [B,C_in,N] (PyTorch NCW)."""
    feat = jnp.transpose(features, (0, 2, 1))              # -> [B, N, C_in]
    feat = (feat * mask[..., None].astype(feat.dtype)).astype(jnp.bfloat16)

    # stem: MLP -> local max-pool aggregation -> MLP
    feat = batched_fused_chain(
        feat, [dict(ws=[params["stem1_w"]], bs=[params["stem1_b"]],
                    residual=False, relu_last=True)])
    pooled = knn_gather_max(xyz, xyz, feat, cfg["nsamples"][0])
    feat = batched_fused_chain(
        pooled, [dict(ws=[params["stem2_w"]], bs=[params["stem2_b"]],
                      residual=False, relu_last=True)])

    end_points = [(xyz, feat)]
    cur_xyz, cur_feat = xyz, feat

    for s, (npts_s, k_s) in enumerate(zip(cfg["npoints"], cfg["nsamples"])):
        # TODO(synk): voxel-grid (sampleDl) subsampling needs the C++ grid op;
        #             deterministic prefix subsampling is used instead.
        sub_xyz = cur_xyz[:, :npts_s]
        pooled = knn_gather_max(sub_xyz, cur_xyz, cur_feat, k_s)  # [B,npts,C]
        # one pallas_call for the WHOLE stage: transition MLP + `depth`
        # residual bottlenecks; activations stay in VMEM across the stage.
        segments = [dict(ws=[params[f"tr{s}_w"]], bs=[params[f"tr{s}_b"]],
                         residual=False, relu_last=True)]
        for d in range(cfg["depth"]):
            blk = params[f"blk{s}_{d}"]
            segments.append(dict(ws=[blk["w1"], blk["w2"], blk["w3"]],
                                 bs=[blk["b1"], blk["b2"], blk["b3"]],
                                 residual=True, relu_last=True))
        h = batched_fused_chain(pooled, segments)
        # TODO(synk): BatchNorm layers omitted (treated as identity at init).
        end_points.append((sub_xyz, h))
        cur_xyz, cur_feat = sub_xyz, h
    return end_points


# --------------------------------------------------------------------------
# SQN head: query multi-level features at weakly labelled points + shared MLP
# (all three head layers fused in a single pallas_call)
# --------------------------------------------------------------------------
def sqn_head(params, weakly_xyz, end_points, batch_inds):
    feats = [three_nn_interpolate(weakly_xyz, batch_inds, lx, lf)
             for (lx, lf) in end_points]
    cat = jnp.concatenate(feats, axis=-1).astype(jnp.bfloat16)   # [M, sum(C)]
    # TODO(synk): dropout omitted (eval-mode forward).
    logits = fused_mlp_chain(
        cat,
        [dict(ws=[params["h1_w"], params["h2_w"], params["h3_w"]],
              bs=[params["h1_b"], params["h2_b"], params["h3_b"]],
              residual=False, relu_last=False)],
        out_dtype=jnp.float32)
    return logits                                                # [M, classes]


def sqn_model_forward(params, xyz, mask, features, weakly_xyz, batch_inds, cfg):
    end_points = resnet_backbone(params, xyz, mask, features, cfg)
    return sqn_head(params, weakly_xyz, end_points, batch_inds)


# --------------------------------------------------------------------------
if __name__ == "__main__":
    B, N, C_IN = 2, 64, 4
    M_WEAK = 8
    cfg = dict(
        width=32, depth=2, bottleneck_ratio=2, num_classes=5,
        input_features_dim=C_IN, nsamples=[8, 8], npoints=[32, 16],
        weak_supervision_ratio=0.1,
    )

    key = jax.random.PRNGKey(0)
    k1, k2, k3, k4 = jax.random.split(key, 4)
    xyz = jax.random.uniform(k1, (B, N, 3), jnp.float32)
    features = jax.random.normal(k2, (B, C_IN, N), jnp.float32)   # NCW like Conv1d
    mask = jnp.ones((B, N), dtype=bool)
    weakly_xyz = jax.random.uniform(k3, (M_WEAK, 3), jnp.float32)
    batch_inds = jax.random.randint(k4, (M_WEAK,), 0, B)

    params = init_params(jax.random.PRNGKey(42), cfg)

    logits = sqn_model_forward(params, xyz, mask, features, weakly_xyz,
                               batch_inds, cfg)
    jax.block_until_ready(logits)
    assert logits.shape == (M_WEAK, cfg["num_classes"])
    print("KERNEL_OK")
</pallas_src>

<mosaic_0001>
module attributes {stable_mosaic.version = 11 : i64} {
  func.func @_k(%arg0: i32, %arg1: memref<8x128xf32, #tpu.memory_space<vmem>>, %arg2: memref<8x128xf32, #tpu.memory_space<vmem>>, %arg3: memref<8x128xf32, #tpu.memory_space<vmem>>) attributes {dimension_semantics = [#tpu.dimension_semantics<arbitrary>], iteration_bounds = array<i64: 2>, scalar_prefetch = 0 : i64, scratch_operands = 0 : i64, tpu.core_type = #tpu.core_type<tc>, window_params = [{transform_indices = @transform_0, window_bounds = array<i64: 8, 128>}, {pipeline_mode = #tpu.pipeline_mode<synchronous>, transform_indices = @transform_1, window_bounds = array<i64: 8, 128>}, {transform_indices = @transform_2, window_bounds = array<i64: 8, 128>}]} {
    %c0 = arith.constant 0 : index
    %c0_0 = arith.constant 0 : index
    %0 = vector.load %arg1[%c0, %c0_0] : memref<8x128xf32, #tpu.memory_space<vmem>>, vector<8x128xf32>
    %c0_1 = arith.constant 0 : index
    %c0_2 = arith.constant 0 : index
    %1 = vector.load %arg2[%c0_1, %c0_2] : memref<8x128xf32, #tpu.memory_space<vmem>>, vector<8x128xf32>
    %2 = arith.addf %0, %1 : vector<8x128xf32>
    %c0_3 = arith.constant 0 : index
    %c0_4 = arith.constant 0 : index
    %3 = vector.load %arg3[%c0_3, %c0_4] : memref<8x128xf32, #tpu.memory_space<vmem>>, vector<8x128xf32>
    tpu.vector_store %arg3[%c0_3, %c0_4], %2 {strides = array<i32>} : memref<8x128xf32, #tpu.memory_space<vmem>>, vector<8x128xf32>,
    return
  }
  func.func @transform_0(%arg0: i32) -> (i32, i32) {
    %c0_i32 = arith.constant 0 : i32
    %c0_i32_0 = arith.constant 0 : i32
    return %arg0, %c0_i32 : i32, i32
  }
  func.func @transform_1(%arg0: i32) -> (i32, i32) {
    %c0_i32 = arith.constant 0 : i32
    %c0_i32_0 = arith.constant 0 : i32
    %c0_i32_1 = arith.constant 0 : i32
    return %c0_i32, %c0_i32_0 : i32, i32
  }
  func.func @transform_2(%arg0: i32) -> (i32, i32) {
    %c0_i32 = arith.constant 0 : i32
    %c0_i32_0 = arith.constant 0 : i32
    return %arg0, %c0_i32 : i32, i32
  }
}

module attributes {stable_mosaic.version = 11 : i64} {
  func.func @_fused_chain_kernel(%arg0: i32, %arg1: memref<128x4xbf16, #tpu.memory_space<vmem>>, %arg2: memref<4x16xbf16, #tpu.memory_space<vmem>>, %arg3: memref<1x16xf32, #tpu.memory_space<vmem>>, %arg4: memref<128x16xbf16, #tpu.memory_space<vmem>>) attributes {dimension_semantics = [#tpu.dimension_semantics<parallel>], iteration_bounds = array<i64: 1>, scalar_prefetch = 0 : i64, scratch_operands = 0 : i64, tpu.core_type = #tpu.core_type<tc>, window_params = [{transform_indices = @transform_0, window_bounds = array<i64: 128, 4>}, {pipeline_mode = #tpu.pipeline_mode<synchronous>, transform_indices = @transform_1, window_bounds = array<i64: 4, 16>}, {pipeline_mode = #tpu.pipeline_mode<synchronous>, transform_indices = @transform_2, window_bounds = array<i64: 1, 16>}, {transform_indices = @transform_3, window_bounds = array<i64: 128, 16>}]} {
    %c0 = arith.constant 0 : index
    %c0_0 = arith.constant 0 : index
    %0 = vector.load %arg1[%c0, %c0_0] : memref<128x4xbf16, #tpu.memory_space<vmem>>, vector<128x4xbf16>
    %c0_1 = arith.constant 0 : index
    %c0_2 = arith.constant 0 : index
    %1 = vector.load %arg2[%c0_1, %c0_2] : memref<4x16xbf16, #tpu.memory_space<vmem>>, vector<4x16xbf16>
    %c0_3 = arith.constant 0 : index
    %c0_4 = arith.constant 0 : index
    %2 = vector.load %arg3[%c0_3, %c0_4] : memref<1x16xf32, #tpu.memory_space<vmem>>, vector<1x16xf32>
    %cst = arith.constant dense<0.000000e+00> : vector<128x16xf32>
    %3 = tpu.matmul %0, %1, %cst {dimension_numbers = #tpu.dot_dimension_numbers<[1], [0], [0], [1], [0, 0, 1, 1], [], []>} : vector<128x4xbf16>, vector<4x16xbf16>, vector<128x16xf32> -> vector<128x16xf32>
    %4 = vector.broadcast %2 : vector<1x16xf32> to vector<128x16xf32>
    %5 = arith.addf %3, %4 : vector<128x16xf32>
    %cst_5 = arith.constant 0.000000e+00 : f32
    %6 = vector.broadcast %cst_5 : f32 to vector<128x16xf32>
    %7 = arith.maximumf %5, %6 : vector<128x16xf32>
    %8 = arith.truncf %7 : vector<128x16xf32> to vector<128x16xbf16>
    %c0_6 = arith.constant 0 : index
    %c0_7 = arith.constant 0 : index
    %9 = vector.load %arg4[%c0_6, %c0_7] : memref<128x16xbf16, #tpu.memory_space<vmem>>, vector<128x16xbf16>
    tpu.vector_store %arg4[%c0_6, %c0_7], %8 {strides = array<i32>} : memref<128x16xbf16, #tpu.memory_space<vmem>>, vector<128x16xbf16>,
    return
  }
  func.func @transform_0(%arg0: i32) -> (i32, i32) {
    %c0_i32 = arith.constant 0 : i32
    %c0_i32_0 = arith.constant 0 : i32
    return %arg0, %c0_i32 : i32, i32
  }
  func.func @transform_1(%arg0: i32) -> (i32, i32) {
    %c0_i32 = arith.constant 0 : i32
    %c0_i32_0 = arith.constant 0 : i32
    %c0_i32_1 = arith.constant 0 : i32
    return %c0_i32, %c0_i32_0 : i32, i32
  }
  func.func @transform_2(%arg0: i32) -> (i32, i32) {
    %c0_i32 = arith.constant 0 : i32
    %c0_i32_0 = arith.constant 0 : i32
    %c0_i32_1 = arith.constant 0 : i32
    return %c0_i32, %c0_i32_0 : i32, i32
  }
  func.func @transform_3(%arg0: i32) -> (i32, i32) {
    %c0_i32 = arith.constant 0 : i32
    %c0_i32_0 = arith.constant 0 : i32
    return %arg0, %c0_i32 : i32, i32
  }
}

</mosaic_0001>

<llo_original>
// kernel: tpu_custom_call.1
$region0: #{tpu_custom_call.1}
  #allocation0 [shape = 'u32[]', space=smem, size = 0x4, offset = 0x4, fixed_abs, tag = 'smem constant byte address 0x4 - core index']
  #allocation1 [shape = 'u32[144,128]{1,0:T(1,128)}', space=vmem, size = 0x12000, scoped, tag = 'internal scratch']
  %s0 = inlined_call_operand.hbm [shape: f32[16,128], index: 0, kind: input, shape index: {}]
  %s1 = inlined_call_operand.hbm [shape: f32[8,128], index: 1, kind: input, shape index: {}]
  %s2 = inlined_call_operand.hbm [shape: f32[16,128], index: 2, kind: output, shape index: {}]
  %s3 = sld [smem:[#allocation0]]
  $region49: #{tpu_custom_call.1} parent=0
    _
  %s5 = ssub.s32 1, %s3
  %s6 = scalar_select 0, %s5, %s3
  $region1: #{tpu_custom_call.1} parent=0
    #allocation2 [shape = 'u8[8192]{0}', space=vmem, size = 0x2000, scoped, tag = 'input window, operand 0']
    #allocation3 [shape = 's32[2]{0}', space=sflag, size = 0x8, scoped, tag = 'scoped memory for tpu_custom_call.1']
    #allocation4 [shape = 's32[2]{0}', space=sflag, size = 0x8, scoped, tag = 'scoped memory for tpu_custom_call.1']
    #allocation5 [shape = 'u8[4096]{0}', space=vmem, size = 0x1000, scoped, tag = 'input window, operand 1, single buffered']
    #allocation6 [shape = 's32[1]{0}', space=sflag, size = 0x4, scoped, tag = 'scoped memory for tpu_custom_call.1']
    #allocation7 [shape = 'u8[8192]{0}', space=vmem, size = 0x2000, scoped, tag = 'output window, operand 0']
    %7 = vsyncpa [#allocation3], 0
    %s8 = scalar_lea.sflag [#allocation3], 1
    %9 = vsyncpa %s8, 0
    %10 = vsyncpa [#allocation6], 0
    %11 = vsyncpa [#allocation4], 0
    %s12 = scalar_lea.sflag [#allocation4], 1
    %13 = vsyncpa %s12, 0
    loop: start=0, step=1, limit=4
    $region2: #{tpu_custom_call.1} parent=1 // loop_pre_header
      _
    $region3: #{tpu_custom_call.1} parent=1 // loop_header
      %s15 = sphi 0, %s19
      %p16 = scmp.ge.s32.totalorder %s15, 4
      %s25 = sphi 0, %s27
      %s28 = sphi 0, %s25
      %s29 = sphi 0, %s28
      %s45 = sphi 0, %s29
      %s49 = sphi 0, %s49
      %s51 = sphi 0, %s49
      %s52 = sphi 0, %s51
      %s66 = sphi 0, %s52
      %s72 = sphi 0, %s74
      %s75 = sphi 0, %s72
      %s76 = sphi 0, %s75
      %s92 = sphi 0, %s76
    $region4: #{tpu_custom_call.1} parent=1 // loop_header_branch
      %18 = sbr.rel (%p16) target = $region8
    $region5: #{tpu_custom_call.1} parent=1 // loop_body
      %s20 = ssub.s32 %s15, 1
      %s21 = ssub.s32 %s15, 2
      %s22 = sadd.s32 %s15, 1
      %s23 = ssub.s32 %s15, %s22
      %p24 = scmp.eq.s32.totalorder %s23, 0
      %s26 = sadd.s32 %s25, 1
      %s27 = scalar_select %p24, %s25, %s26
      %p30 = pneg %p24
      %p31 = scmp.eq.s32.totalorder %s15, 1
      %p32 = por %p30, %p31
      %p33 = scmp.ne.s32.totalorder %s25, %s28
      %p34 = scmp.eq.s32.totalorder %s15, 0
      %p35 = por %p33, %p34
      %p36 = scmp.ne.s32.totalorder %s25, %s28
      %p37 = scmp.eq.s32.totalorder %s20, 1
      %p38 = por %p36, %p37
      %p39 = scmp.ne.s32.totalorder %s28, %s29
      %p40 = scmp.eq.s32.totalorder %s20, 0
      %p41 = por %p39, %p40
      %p42 = scmp.ne.s32.totalorder %s28, %s29
      %p43 = scmp.eq.s32.totalorder %s21, 1
      %p44 = por %p42, %p43
      %p46 = scmp.ne.s32.totalorder %s29, %s45
      %p47 = scmp.eq.s32.totalorder %s21, 0
      %p48 = por %p46, %p47
      %s50 = sadd.s32 %s49, 1
      %p53 = scmp.eq.s32.totalorder %s15, 1
      %p54 = scmp.ne.s32.totalorder %s49, %s51
      %p55 = scmp.eq.s32.totalorder %s15, 0
      %p56 = por %p54, %p55
      %p57 = scmp.ne.s32.totalorder %s49, %s51
      %p58 = scmp.eq.s32.totalorder %s20, 1
      %p59 = por %p57, %p58
      %p60 = scmp.ne.s32.totalorder %s51, %s52
      %p61 = scmp.eq.s32.totalorder %s20, 0
      %p62 = por %p60, %p61
      %p63 = scmp.ne.s32.totalorder %s51, %s52
      %p64 = scmp.eq.s32.totalorder %s21, 1
      %p65 = por %p63, %p64
      %p67 = scmp.ne.s32.totalorder %s52, %s66
      %p68 = scmp.eq.s32.totalorder %s21, 0
      %p69 = por %p67, %p68
      %s70 = ssub.s32 %s15, %s22
      %p71 = scmp.eq.s32.totalorder %s70, 0
      %s73 = sadd.s32 %s72, 1
      %s74 = scalar_select %p71, %s72, %s73
      %p77 = pneg %p71
      %p78 = scmp.eq.s32.totalorder %s15, 1
      %p79 = por %p77, %p78
      %p80 = scmp.ne.s32.totalorder %s72, %s75
      %p81 = scmp.eq.s32.totalorder %s15, 0
      %p82 = por %p80, %p81
      %p83 = scmp.ne.s32.totalorder %s72, %s75
      %p84 = scmp.eq.s32.totalorder %s20, 1
      %p85 = por %p83, %p84
      %p86 = scmp.ne.s32.totalorder %s75, %s76
      %p87 = scmp.eq.s32.totalorder %s20, 0
      %p88 = por %p86, %p87
      %p89 = scmp.ne.s32.totalorder %s75, %s76
      %p90 = scmp.eq.s32.totalorder %s21, 1
      %p91 = por %p89, %p90
      %p93 = scmp.ne.s32.totalorder %s76, %s92
      %p94 = scmp.eq.s32.totalorder %s21, 0
      %p95 = por %p93, %p94
      %p96 = scmp.le.s32.totalorder 1, %s15
      %p97 = scmp.lt.s32.totalorder %s15, 3
      %p98 = pnand %p96, %p97
      %p99 = pneg %p98
      // Predicated region
      $region9: #{tpu_custom_call.1} parent=5 // pred_check
        _
      $region10: #{tpu_custom_call.1} parent=5 // pred_check_branch
        %101 = sbr.rel (%p98) target = $region12
      $region11: #{tpu_custom_call.1} parent=5 // pred_region
        %s102 = ssub.s32 %s15, 1
        // Predicated region
        $region13: #{tpu_custom_call.1} parent=11 // pred_check
          %p103 = pneg %p62
        $region14: #{tpu_custom_call.1} parent=11 // pred_check_branch
          %105 = sbr.rel (%p103) target = $region16
        $region15: #{tpu_custom_call.1} parent=11 // pred_region
          %s107 = ssub.s32 128, 128
          %108 = vsyncadd [#allocation6], %s107
          %s110 = sshll.u32 [#allocation5], 4
          %s111 = int_to_ptr.vmem [resolvable:$true] %s110
          %113 = dma.hbm_to_vmem [thread:$0]  %s1, 128, %s111, [#allocation6]
        $region16: #{tpu_custom_call.1} parent=11 // pred_fallthru
          _
      $region12: #{tpu_custom_call.1} parent=5 // pred_fallthru
        _
      %p114 = scmp.lt.s32.totalorder %s15, 2
      // Predicated region
      $region17: #{tpu_custom_call.1} parent=5 // pred_check
        %p115 = pneg %p114
      $region18: #{tpu_custom_call.1} parent=5 // pred_check_branch
        %117 = sbr.rel (%p115) target = $region20
      $region19: #{tpu_custom_call.1} parent=5 // pred_region
        // Predicated region
        $region21: #{tpu_custom_call.1} parent=19 // pred_check
          %p118 = pneg %p35
        $region22: #{tpu_custom_call.1} parent=19 // pred_check_branch
          %120 = sbr.rel (%p118) target = $region24
        $region23: #{tpu_custom_call.1} parent=19 // pred_region
          %s121 = sand.u32 %s25, 1
          %s122 = scalar_lea.sflag [#allocation3], %s121
          %s123 = sand.u32 %s25, 1
          %s124 = smul.addr %s123, 8
          %s125 = scalar_lea.vmem [#allocation2], %s124
          %s127 = ssub.s32 128, 128
          %128 = vsyncadd %s122, %s127
          %s129 = smul.addr %s15, 128
          %s130 = scalar_lea.hbm %s0, %s129
          %s132 = sshll.u32 %s125, 4
          %s133 = int_to_ptr.vmem [resolvable:$true] %s132
          %135 = dma.hbm_to_vmem [thread:$0]  %s130, 128, %s133, %s122
        $region24: #{tpu_custom_call.1} parent=19 // pred_fallthru
          _
      $region20: #{tpu_custom_call.1} parent=5 // pred_fallthru
        _
      %p136 = scmp.le.s32.totalorder 1, %s15
      %p137 = scmp.lt.s32.totalorder %s15, 3
      %p138 = pnand %p136, %p137
      %p139 = pneg %p138
      // Predicated region
      $region25: #{tpu_custom_call.1} parent=5 // pred_check
        _
      $region26: #{tpu_custom_call.1} parent=5 // pred_check_branch
        %141 = sbr.rel (%p138) target = $region28
      $region27: #{tpu_custom_call.1} parent=5 // pred_region
        %s142 = ssub.s32 %s15, 1
        %s143 = sand.u32 %s28, 1
        %s144 = scalar_lea.sflag [#allocation3], %s143
        %s145 = sand.u32 %s28, 1
        %s146 = smul.addr %s145, 8
        %s147 = scalar_lea.vmem [#allocation2], %s146
        // Predicated region
        $region29: #{tpu_custom_call.1} parent=27 // pred_check
          %p148 = pneg %p41
        $region30: #{tpu_custom_call.1} parent=27 // pred_check_branch
          %150 = sbr.rel (%p148) target = $region32
        $region31: #{tpu_custom_call.1} parent=27 // pred_region
          %151 = dma.done %s144, 128
        $region32: #{tpu_custom_call.1} parent=27 // pred_fallthru
          _
        // Predicated region
        $region33: #{tpu_custom_call.1} parent=27 // pred_check
          %p152 = pneg %p62
        $region34: #{tpu_custom_call.1} parent=27 // pred_check_branch
          %154 = sbr.rel (%p152) target = $region36
        $region35: #{tpu_custom_call.1} parent=27 // pred_region
          %155 = dma.done [#allocation6], 128
        $region36: #{tpu_custom_call.1} parent=27 // pred_fallthru
          _
        %s156 = sand.u32 %s28, 1
        %s157 = scalar_lea.sflag [#allocation3], %s156
        %s158 = sand.u32 %s28, 1
        %s159 = smul.addr %s158, 8
        %s160 = scalar_lea.vmem [#allocation2], %s159
        %p161 = pneg %p41
        %p162 = pneg %p38
        %p163 = pneg %p62
        %p164 = pneg %p59
        %p165 = pneg %p88
        %p166 = pneg %p85
        %s167 = sand.u32 %s75, 1
        %s168 = scalar_lea.sflag [#allocation4], %s167
        %s169 = sand.u32 %s75, 1
        %s170 = smul.addr %s169, 8
        %s171 = scalar_lea.vmem [#allocation7], %s170
        %v172 = vld [vmem:[%s147] sm:$0xff]
        %v173 = vld [vmem:[#allocation5] sm:$0xff]
        %v174 = vadd.f32 %v172, %v173
        %175 = vst [vmem:[%s171] sm:$0xff] %v174
        %s176 = sand.u32 %s75, 1
        %s177 = scalar_lea.sflag [#allocation4], %s176
        %s178 = sand.u32 %s75, 1
        %s179 = smul.addr %s178, 8
        %s180 = scalar_lea.vmem [#allocation7], %s179
        // Predicated region
        $region37: #{tpu_custom_call.1} parent=27 // pred_check
          %p181 = pneg %p85
        $region38: #{tpu_custom_call.1} parent=27 // pred_check_branch
          %183 = sbr.rel (%p181) target = $region40
        $region39: #{tpu_custom_call.1} parent=27 // pred_region
          %s185 = ssub.s32 128, 128
          %186 = vsyncadd %s177, %s185
          %s187 = smul.addr %s20, 128
          %s188 = scalar_lea.hbm %s2, %s187
          %s190 = sshll.u32 %s180, 4
          %s191 = int_to_ptr.vmem [resolvable:$true] %s190
          %193 = dma.vmem_to_hbm [thread:$0]  %s191, 128, %s188, %s177
        $region40: #{tpu_custom_call.1} parent=27 // pred_fallthru
          _
      $region28: #{tpu_custom_call.1} parent=5 // pred_fallthru
        _
      %p194 = scmp.le.s32.totalorder 2, %s15
      // Predicated region
      $region41: #{tpu_custom_call.1} parent=5 // pred_check
        %p195 = pneg %p194
      $region42: #{tpu_custom_call.1} parent=5 // pred_check_branch
        %197 = sbr.rel (%p195) target = $region44
      $region43: #{tpu_custom_call.1} parent=5 // pred_region
        %s198 = ssub.s32 %s15, 2
        // Predicated region
        $region45: #{tpu_custom_call.1} parent=43 // pred_check
          %p199 = pneg %p91
        $region46: #{tpu_custom_call.1} parent=43 // pred_check_branch
          %201 = sbr.rel (%p199) target = $region48
        $region47: #{tpu_custom_call.1} parent=43 // pred_region
          %s202 = sand.u32 %s76, 1
          %s203 = scalar_lea.sflag [#allocation4], %s202
          %s204 = sand.u32 %s76, 1
          %s205 = smul.addr %s204, 8
          %s206 = scalar_lea.vmem [#allocation7], %s205
          %207 = dma.done %s203, 128
        $region48: #{tpu_custom_call.1} parent=43 // pred_fallthru
          _
      $region44: #{tpu_custom_call.1} parent=5 // pred_fallthru
        _
    $region6: #{tpu_custom_call.1} parent=1 // loop_footer
      %s19 = sadd.s32 1, %s15
    $region7: #{tpu_custom_call.1} parent=1 // loop_footer_branch
      %14 = sbr.rel target = $region3
    $region8: #{tpu_custom_call.1} parent=1 // loop_exit
      _
    %208 = vsyncpa [#allocation3], 1
    %s209 = scalar_lea.sflag [#allocation3], 1
    %210 = vsyncpa %s209, 1
    %211 = vsyncpa [#allocation6], 1
    %212 = vsyncpa [#allocation4], 1
    %s213 = scalar_lea.sflag [#allocation4], 1
    %214 = vsyncpa %s213, 1

// kernel: tpu_custom_call.1
$region0: #{tpu_custom_call.1}
  #allocation0 [shape = 'u32[]', space=smem, size = 0x4, offset = 0x4, fixed_abs, tag = 'smem constant byte address 0x4 - core index']
  #allocation1 [shape = 'u32[144,128]{1,0:T(1,128)}', space=vmem, size = 0x12000, scoped, tag = 'internal scratch']
  %s0 = inlined_call_operand.vmem [shape: bf16[128,4], index: 0, kind: input, shape index: {}]
  %s1 = inlined_call_operand.vmem [shape: bf16[4,16], index: 1, kind: input, shape index: {}]
  %s2 = inlined_call_operand.vmem [shape: f32[1,16], index: 2, kind: input, shape index: {}]
  %s3 = inlined_call_operand.vmem [shape: bf16[128,16], index: 3, kind: output, shape index: {}]
  %s4 = sld [smem:[#allocation0]]
  $region22: #{tpu_custom_call.1} parent=0
    _
  %s6 = ssub.s32 1, %s4
  %s7 = scalar_select 0, %s6, %s4
  // Predicated region
  $region2: #{tpu_custom_call.1} parent=0 // pred_check
    _
  $region3: #{tpu_custom_call.1} parent=0 // pred_check_branch
    %9 = sbr.rel (0) target = $region5
  $region4: #{tpu_custom_call.1} parent=0 // pred_region
    _
  $region5: #{tpu_custom_call.1} parent=0 // pred_fallthru
    _
  // Predicated region
  $region6: #{tpu_custom_call.1} parent=0 // pred_check
    _
  $region7: #{tpu_custom_call.1} parent=0 // pred_check_branch
    %11 = sbr.rel (0) target = $region9
  $region8: #{tpu_custom_call.1} parent=0 // pred_region
    _
  $region9: #{tpu_custom_call.1} parent=0 // pred_fallthru
    _
  // Predicated region
  $region10: #{tpu_custom_call.1} parent=0 // pred_check
    _
  $region11: #{tpu_custom_call.1} parent=0 // pred_check_branch
    %13 = sbr.rel (0) target = $region13
  $region12: #{tpu_custom_call.1} parent=0 // pred_region
    _
  $region13: #{tpu_custom_call.1} parent=0 // pred_fallthru
    _
  %v15 = vld [vmem:[%s0] sm:$0xf]
  %v16 = vld [vmem:[%s0 + $0x4] sm:$0xf]
  %v17 = vld [vmem:[%s0 + $0x8] sm:$0xf]
  %v18 = vld [vmem:[%s0 + $0xc] sm:$0xf]
  %v19 = vld [vmem:[%s0 + $0x10] sm:$0xf]
  %v20 = vld [vmem:[%s0 + $0x14] sm:$0xf]
  %v21 = vld [vmem:[%s0 + $0x18] sm:$0xf]
  %v22 = vld [vmem:[%s0 + $0x1c] sm:$0xf]
  %v23 = vld [vmem:[%s0 + $0x20] sm:$0xf]
  %v24 = vld [vmem:[%s0 + $0x24] sm:$0xf]
  %v25 = vld [vmem:[%s0 + $0x28] sm:$0xf]
  %v26 = vld [vmem:[%s0 + $0x2c] sm:$0xf]
  %v27 = vld [vmem:[%s0 + $0x30] sm:$0xf]
  %v28 = vld [vmem:[%s0 + $0x34] sm:$0xf]
  %v29 = vld [vmem:[%s0 + $0x38] sm:$0xf]
  %v30 = vld [vmem:[%s0 + $0x3c] sm:$0xf]
  %v31 = vld [vmem:[%s1] sm:$0x3]
  %v32 = vld [vmem:[%s2] sm:$0x1]
  %v34 = vlaneseq
  %v35 = vshrl.u32 %v34, 7
  %v36 = vsub.s32 0, %v35
  %v37 = vrot.slane %v32, %v36
  %v55 = vunpack.c.l.b16 %v15
  %v56 = vunpack.c.l.b16 %v16
  %v57 = vunpack.c.l.b16 %v17
  %v58 = vunpack.c.l.b16 %v18
  %v59 = vunpack.c.l.b16 %v19
  %v60 = vunpack.c.l.b16 %v20
  %v61 = vunpack.c.l.b16 %v21
  %v62 = vunpack.c.l.b16 %v22
  %v63 = vunpack.c.l.b16 %v23
  %v64 = vunpack.c.l.b16 %v24
  %v65 = vunpack.c.l.b16 %v25
  %v66 = vunpack.c.l.b16 %v26
  %v67 = vunpack.c.l.b16 %v27
  %v68 = vunpack.c.l.b16 %v28
  %v69 = vunpack.c.l.b16 %v29
  %v70 = vunpack.c.l.b16 %v30
  %v71 = vpack.c.b16 %v56, %v55
  %v72 = vpack.c.b16 %v58, %v57
  %v73 = vpack.c.b16 %v60, %v59
  %v74 = vpack.c.b16 %v62, %v61
  %v75 = vpack.c.b16 %v64, %v63
  %v76 = vpack.c.b16 %v66, %v65
  %v77 = vpack.c.b16 %v68, %v67
  %v78 = vpack.c.b16 %v70, %v69
  %vm79 = vcmask 31744
  %v81 = vsel %vm79, %v71, 0
  %v84 = vsel %vm79, %v72, 0
  %v87 = vsel %vm79, %v73, 0
  %v90 = vsel %vm79, %v74, 0
  %v93 = vsel %vm79, %v75, 0
  %v96 = vsel %vm79, %v76, 0
  %v99 = vsel %vm79, %v77, 0
  %v102 = vsel %vm79, %v78, 0
  %vm104 = vcmask 1041408
  %v106 = vsel %vm104, %v31, 0
  %108 = vmatprep.subr.bf16.mxu0 0
  %109 = vmatpush1.bf16.msra.mxu0 0
  %110 = vmatprep.subr.bf16.mxu0 0
  %111 = vmatpush1.bf16.msra.mxu0 0
  %112 = vmatprep.subr.bf16.mxu0 0
  %113 = vmatpush1.bf16.msra.mxu0 0
  %114 = vmatprep.subr.bf16.mxu0 0
  %115 = vmatpush1.bf16.msra.mxu0 0
  %116 = vmatprep.subr.bf16.mxu0 0
  %117 = vmatpush1.bf16.msra.mxu0 0
  %118 = vmatprep.subr.bf16.mxu0 0
  %119 = vmatpush1.bf16.msra.mxu0 0
  %120 = vmatprep.subr.bf16.mxu0 0
  %121 = vmatpush1.bf16.msra.mxu0 0
  %122 = vmatprep.subr.bf16.mxu0 0
  %123 = vmatpush1.bf16.msra.mxu0 %v106
  %124 = vmatprep.subr.bf16.mxu0 0
  %125 = vmatpush2.bf16.msra.mxu0 0
  %126 = vmatprep.subr.bf16.mxu0 0
  %127 = vmatpush2.bf16.msra.mxu0 0
  %128 = vmatprep.subr.bf16.mxu0 0
  %129 = vmatpush2.bf16.msra.mxu0 0
  %130 = vmatprep.subr.bf16.mxu0 0
  %131 = vmatpush2.bf16.msra.mxu0 0
  %132 = vmatprep.subr.bf16.mxu0 0
  %133 = vmatpush2.bf16.msra.mxu0 0
  %134 = vmatprep.subr.bf16.mxu0 0
  %135 = vmatpush2.bf16.msra.mxu0 0
  %136 = vmatprep.subr.bf16.mxu0 0
  %137 = vmatpush2.bf16.msra.mxu0 0
  %138 = vmatprep.subr.bf16.mxu0 0
  %139 = vmatpush2.bf16.msra.mxu0 0
  %140 = vmatprep.mubr.bf16.mxu0 0
  %141 = vmatmul.mubr.bf16.gmra.mxu0 %v81
  %v142 = vpop.f32.mrf.mxu0
  %v143 = vadd.f32 %v37, %v142
  %v144 = vpop.f32.mrf.mxu0
  %v145 = vpop.f32.mrf.mxu0
  %v146 = vadd.f32 %v37, %v145
  %v147 = vpop.f32.mrf.mxu0
  %148 = vmatprep.mubr.bf16.mxu0 0
  %149 = vmatmul.mubr.bf16.gmra.mxu0 %v84
  %v150 = vpop.f32.mrf.mxu0
  %v151 = vadd.f32 %v37, %v150
  %v152 = vpop.f32.mrf.mxu0
  %v153 = vpop.f32.mrf.mxu0
  %v154 = vadd.f32 %v37, %v153
  %v155 = vpop.f32.mrf.mxu0
  %156 = vmatprep.mubr.bf16.mxu0 0
  %157 = vmatmul.mubr.bf16.gmra.mxu0 %v87
  %v158 = vpop.f32.mrf.mxu0
  %v159 = vadd.f32 %v37, %v158
  %v160 = vpop.f32.mrf.mxu0
  %v161 = vpop.f32.mrf.mxu0
  %v162 = vadd.f32 %v37, %v161
  %v163 = vpop.f32.mrf.mxu0
  %164 = vmatprep.mubr.bf16.mxu0 0
  %165 = vmatmul.mubr.bf16.gmra.mxu0 %v90
  %v166 = vpop.f32.mrf.mxu0
  %v167 = vadd.f32 %v37, %v166
  %v168 = vpop.f32.mrf.mxu0
  %v169 = vpop.f32.mrf.mxu0
  %v170 = vadd.f32 %v37, %v169
  %v171 = vpop.f32.mrf.mxu0
  %172 = vmatprep.mubr.bf16.mxu0 0
  %173 = vmatmul.mubr.bf16.gmra.mxu0 %v93
  %v174 = vpop.f32.mrf.mxu0
  %v175 = vadd.f32 %v37, %v174
  %v176 = vpop.f32.mrf.mxu0
  %v177 = vpop.f32.mrf.mxu0
  %v178 = vadd.f32 %v37, %v177
  %v179 = vpop.f32.mrf.mxu0
  %180 = vmatprep.mubr.bf16.mxu0 0
  %181 = vmatmul.mubr.bf16.gmra.mxu0 %v96
  %v182 = vpop.f32.mrf.mxu0
  %v183 = vadd.f32 %v37, %v182
  %v184 = vpop.f32.mrf.mxu0
  %v185 = vpop.f32.mrf.mxu0
  %v186 = vadd.f32 %v37, %v185
  %v187 = vpop.f32.mrf.mxu0
  %188 = vmatprep.mubr.bf16.mxu0 0
  %189 = vmatmul.mubr.bf16.gmra.mxu0 %v99
  %v190 = vpop.f32.mrf.mxu0
  %v191 = vadd.f32 %v37, %v190
  %v192 = vpop.f32.mrf.mxu0
  %v193 = vpop.f32.mrf.mxu0
  %v194 = vadd.f32 %v37, %v193
  %v195 = vpop.f32.mrf.mxu0
  %196 = vmatprep.mubr.bf16.mxu0 0
  %197 = vmatmul.mubr.bf16.gmra.mxu0 %v102
  %v198 = vpop.f32.mrf.mxu0
  %v199 = vadd.f32 %v37, %v198
  %v200 = vpop.f32.mrf.mxu0
  %v201 = vpop.f32.mrf.mxu0
  %v202 = vadd.f32 %v37, %v201
  %v203 = vpop.f32.mrf.mxu0
  %204 = vdwg.mxu0
  %v205 = vmax.f32 %v143, 0.0
  %v206 = vmax.f32 %v146, 0.0
  %v207 = vmax.f32 %v151, 0.0
  %v208 = vmax.f32 %v154, 0.0
  %v209 = vmax.f32 %v159, 0.0
  %v210 = vmax.f32 %v162, 0.0
  %v211 = vmax.f32 %v167, 0.0
  %v212 = vmax.f32 %v170, 0.0
  %v213 = vmax.f32 %v175, 0.0
  %v214 = vmax.f32 %v178, 0.0
  %v215 = vmax.f32 %v183, 0.0
  %v216 = vmax.f32 %v186, 0.0
  %v217 = vmax.f32 %v191, 0.0
  %v218 = vmax.f32 %v194, 0.0
  %v219 = vmax.f32 %v199, 0.0
  %v220 = vmax.f32 %v202, 0.0
  %v221 = vpack.c.bf16 %v206, %v205
  %v222 = vpack.c.bf16 %v208, %v207
  %v223 = vpack.c.bf16 %v210, %v209
  %v224 = vpack.c.bf16 %v212, %v211
  %v225 = vpack.c.bf16 %v214, %v213
  %v226 = vpack.c.bf16 %v216, %v215
  %v227 = vpack.c.bf16 %v218, %v217
  %v228 = vpack.c.bf16 %v220, %v219
  %v237 = vunpack.c.l.b16 %v221
  %v238 = vunpack.c.h.b16 %v221
  %v239 = vunpack.c.l.b16 %v222
  %v240 = vunpack.c.h.b16 %v222
  %v241 = vunpack.c.l.b16 %v223
  %v242 = vunpack.c.h.b16 %v223
  %v243 = vunpack.c.l.b16 %v224
  %v244 = vunpack.c.h.b16 %v224
  %v245 = vunpack.c.l.b16 %v225
  %v246 = vunpack.c.h.b16 %v225
  %v247 = vunpack.c.l.b16 %v226
  %v248 = vunpack.c.h.b16 %v226
  %v249 = vunpack.c.l.b16 %v227
  %v250 = vunpack.c.h.b16 %v227
  %v251 = vunpack.c.l.b16 %v228
  %v252 = vunpack.c.h.b16 %v228
  %v253 = vpack.c.b16 %v237, %v237
  %v254 = vpack.c.b16 %v238, %v238
  %v255 = vpack.c.b16 %v239, %v239
  %v256 = vpack.c.b16 %v240, %v240
  %v257 = vpack.c.b16 %v241, %v241
  %v258 = vpack.c.b16 %v242, %v242
  %v259 = vpack.c.b16 %v243, %v243
  %v260 = vpack.c.b16 %v244, %v244
  %v261 = vpack.c.b16 %v245, %v245
  %v262 = vpack.c.b16 %v246, %v246
  %v263 = vpack.c.b16 %v247, %v247
  %v264 = vpack.c.b16 %v248, %v248
  %v265 = vpack.c.b16 %v249, %v249
  %v266 = vpack.c.b16 %v250, %v250
  %v267 = vpack.c.b16 %v251, %v251
  %v268 = vpack.c.b16 %v252, %v252
  %vm285 = vcmask 125952
  %286 = vst.msk [vmem:[%s3] sm:$0xf] %vm285, %v253
  %287 = vst.msk [vmem:[%s3 + $0x4] sm:$0xf] %vm285, %v254
  %288 = vst.msk [vmem:[%s3 + $0x8] sm:$0xf] %vm285, %v255
  %289 = vst.msk [vmem:[%s3 + $0xc] sm:$0xf] %vm285, %v256
  %290 = vst.msk [vmem:[%s3 + $0x10] sm:$0xf] %vm285, %v257
  %291 = vst.msk [vmem:[%s3 + $0x14] sm:$0xf] %vm285, %v258
  %292 = vst.msk [vmem:[%s3 + $0x18] sm:$0xf] %vm285, %v259
  %293 = vst.msk [vmem:[%s3 + $0x1c] sm:$0xf] %vm285, %v260
  %294 = vst.msk [vmem:[%s3 + $0x20] sm:$0xf] %vm285, %v261
  %295 = vst.msk [vmem:[%s3 + $0x24] sm:$0xf] %vm285, %v262
  %296 = vst.msk [vmem:[%s3 + $0x28] sm:$0xf] %vm285, %v263
  %297 = vst.msk [vmem:[%s3 + $0x2c] sm:$0xf] %vm285, %v264
  %298 = vst.msk [vmem:[%s3 + $0x30] sm:$0xf] %vm285, %v265
  %299 = vst.msk [vmem:[%s3 + $0x34] sm:$0xf] %vm285, %v266
  %300 = vst.msk [vmem:[%s3 + $0x38] sm:$0xf] %vm285, %v267
  %301 = vst.msk [vmem:[%s3 + $0x3c] sm:$0xf] %vm285, %v268
  // Predicated region
  $region14: #{tpu_custom_call.1} parent=0 // pred_check
    _
  $region15: #{tpu_custom_call.1} parent=0 // pred_check_branch
    %303 = sbr.rel (0) target = $region17
  $region16: #{tpu_custom_call.1} parent=0 // pred_region
    _
  $region17: #{tpu_custom_call.1} parent=0 // pred_fallthru
    _
  // Predicated region
  $region18: #{tpu_custom_call.1} parent=0 // pred_check
    _
  $region19: #{tpu_custom_call.1} parent=0 // pred_check_branch
    %305 = sbr.rel (0) target = $region21
  $region20: #{tpu_custom_call.1} parent=0 // pred_region
    _
  $region21: #{tpu_custom_call.1} parent=0 // pred_fallthru
    _

</llo_original>
